<compile_context>
chip_gen: v5e
topology: v5e:2x2
jax: 0.10.0
libtpu: 0.0.40
codegen_flags: <defaults>
</compile_context>

<pallas_src>
import functools

import jax
import jax.numpy as jnp
from jax import lax
from jax.experimental import pallas as pl
from jax.experimental.pallas import tpu as pltpu


# ----------------------------------------------------------------------------
# In-kernel helpers
# ----------------------------------------------------------------------------
def _cum_mask(seq):
    """Present-since-t=0 mask == cumprod of a {0,1} presence mask along time,
    with row 0 zeroed (matches torch `seq.cumprod(0); mask[0] = 0`).

    cumprod(x) for x in {0,1} == (prefix_sum(1-x) == 0). The prefix sum is a
    Hillis-Steele shift-and-add scan: ceil(log2(T)) steps, each one XLU
    sublane rotate (pltpu.roll) + a VPU masked add. No zeros materialization
    or concatenate relayout per step; the iota row index is hoisted.
    """
    T = seq.shape[0]
    # Robust to non-exactly-binary inputs (e.g. 0.9999 from a dtype cast).
    missing = jnp.where(seq > 0.5, 0.0, 1.0).astype(jnp.float32)
    row = lax.broadcasted_iota(jnp.int32, seq.shape, 0)     # hoisted out of loop
    acc = missing
    shift = 1
    while shift < T:                                        # ceil(log2(T)) steps
        rolled = pltpu.roll(acc, shift, axis=0)             # acc[t - shift] (wraps)
        acc = acc + jnp.where(row >= shift, rolled, 0.0)    # mask out the wrap
        shift *= 2
    mask = jnp.where(acc == 0.0, 1.0, 0.0)
    return jnp.where(row == 0, 0.0, mask)


def _expand_mask(mask, coords):
    """(T, N) -> (T, N*coords), repeating each agent column `coords` times in
    coordinate-fastest order (matches reshape (T, N, C) -> (T, N*C)).

    Built as a tiny one-hot MXU matmul: lowering-safe (no in-kernel
    repeat/reshape relayouts) and uses the otherwise-idle MXU.
    """
    n = mask.shape[1]
    nc = n * coords
    n_idx = lax.broadcasted_iota(jnp.int32, (n, nc), 0)
    k_idx = lax.broadcasted_iota(jnp.int32, (n, nc), 1)
    lo = n_idx * coords
    expand = ((k_idx >= lo) & (k_idx < lo + coords)).astype(jnp.float32)
    return jnp.dot(mask, expand, preferred_element_type=jnp.float32)


# ----------------------------------------------------------------------------
# Fused kernel (small path): whole arrays resident in VMEM, no grid.
#   seq : (T, N)   out : (S, T, N*C)   gt : (T, N*C)
# Outputs: loss_mask (T, N) f32 in VMEM, scalar loss in SMEM.
# ----------------------------------------------------------------------------
def _fused_kernel(seq_ref, out_ref, gt_ref, mask_ref, loss_ref, *, coords):
    mask = _cum_mask(seq_ref[...].astype(jnp.float32))          # (T, N)
    mask_ref[...] = mask
    mask2 = _expand_mask(mask, coords)                          # (T, N*C)

    out = out_ref[...].astype(jnp.float32)                      # (S, T, N*C)
    gt = gt_ref[...].astype(jnp.float32)                        # (T, N*C)
    d = out - gt[None, :, :]
    masked = d * d * mask2[None, :, :]
    per_sample = jnp.sum(jnp.sum(masked, axis=2), axis=1, keepdims=True)  # (S, 1)
    # Same semantics as the torch reference: loss_mask.sum() == 0 -> inf/nan.
    loss_ref[0, 0] = jnp.min(per_sample) / jnp.sum(mask)


# ----------------------------------------------------------------------------
# Fused kernel (tiled path): grid over the agent/lane axis, f32 accumulators,
# init at step 0, finalize (min + divide -> SMEM scalar) at the last step.
# ----------------------------------------------------------------------------
def _fused_tiled_kernel(seq_ref, out_ref, gt_ref, mask_ref, loss_ref,
                        acc_ref, den_ref, *, coords):
    j = pl.program_id(0)

    @pl.when(j == 0)
    def _init():
        acc_ref[...] = jnp.zeros_like(acc_ref)
        den_ref[...] = jnp.zeros_like(den_ref)

    mask = _cum_mask(seq_ref[...].astype(jnp.float32))          # (T, TILE_N)
    mask_ref[...] = mask
    mask2 = _expand_mask(mask, coords)                          # (T, TILE_NC)

    out = out_ref[...].astype(jnp.float32)                      # (S, T, TILE_NC)
    gt = gt_ref[...].astype(jnp.float32)                        # (T, TILE_NC)
    d = out - gt[None, :, :]
    masked = d * d * mask2[None, :, :]
    acc_ref[...] += jnp.sum(jnp.sum(masked, axis=2), axis=1, keepdims=True)
    den_ref[...] += jnp.sum(mask)

    @pl.when(j == pl.num_programs(0) - 1)
    def _finalize():
        loss_ref[0, 0] = jnp.min(acc_ref[...]) / jnp.sum(den_ref[...])
    # TODO(synk): v7x dual-TC variant — leading size-2 "parallel" axis with
    # per-core partial (S,1)/denom outputs combined with a trivial jnp op.


# ----------------------------------------------------------------------------
# Wrappers
# ----------------------------------------------------------------------------
def _vmem_spec():
    return pl.BlockSpec(memory_space=pltpu.MemorySpace.VMEM)


def _smem_spec():
    return pl.BlockSpec(memory_space=pltpu.MemorySpace.SMEM)


def _cost(out2, gt2, small, extra_out_bytes):
    bytes_accessed = (out2.size * out2.dtype.itemsize
                      + gt2.size * gt2.dtype.itemsize
                      + small.size * 4 + extra_out_bytes + 4)
    return pl.CostEstimate(flops=4 * out2.size, transcendentals=0,
                           bytes_accessed=int(bytes_accessed))


_TILE_NC_CANDIDATES = (2048, 1024, 512, 256)
_VMEM_TILE_BUDGET_BYTES = 16 * 1024 * 1024   # ~half of v7x's 32 MiB scoped default


def _pick_tile_nc(S, T, NC, C, itemsize):
    """Largest candidate tile over the flattened agent*coord axis that keeps
    the double-buffered (S, T, TILE_NC) block within the v7x VMEM budget and
    keeps every BlockSpec's trailing dims (8, 128)-aligned. None -> small path."""
    for t in _TILE_NC_CANDIDATES:
        if t >= NC:
            continue
        if t % (128 * C) != 0 or NC % t != 0:
            continue
        if 2 * S * T * t * itemsize > _VMEM_TILE_BUDGET_BYTES:
            continue
        return t
    return None
    # TODO(synk): pad / pl.BoundedSlice the agent axis when N*C is large but
    # not divisible by an aligned tile; such cases currently fall back to the
    # whole-array path.


def _fused_small_call(outputs, ground_truth, seq_list):
    S, T, N, C = outputs.shape
    out2 = outputs.reshape(S, T, N * C)        # free (contiguous) reshape
    gt2 = ground_truth.reshape(T, N * C)       # free reshape
    seq = seq_list.astype(jnp.float32)
    return pl.pallas_call(
        functools.partial(_fused_kernel, coords=C),
        out_shape=(jax.ShapeDtypeStruct((T, N), jnp.float32),
                   jax.ShapeDtypeStruct((1, 1), jnp.float32)),
        in_specs=[_vmem_spec(), _vmem_spec(), _vmem_spec()],
        out_specs=(_vmem_spec(), _smem_spec()),
        cost_estimate=_cost(out2, gt2, seq, T * N * 4),
    )(seq, out2, gt2)


def _fused_tiled_call(outputs, ground_truth, seq_list, tile_nc):
    S, T, N, C = outputs.shape
    NC = N * C
    tile_n = tile_nc // C
    out2 = outputs.reshape(S, T, NC)           # free reshape; dtype kept on the wire
    gt2 = ground_truth.reshape(T, NC)
    seq = seq_list.astype(jnp.float32)
    return pl.pallas_call(
        functools.partial(_fused_tiled_kernel, coords=C),
        out_shape=(jax.ShapeDtypeStruct((T, N), jnp.float32),
                   jax.ShapeDtypeStruct((1, 1), jnp.float32)),
        grid=(NC // tile_nc,),
        in_specs=[
            pl.BlockSpec((T, tile_n), lambda j: (0, j)),
            pl.BlockSpec((S, T, tile_nc), lambda j: (0, 0, j)),
            pl.BlockSpec((T, tile_nc), lambda j: (0, j)),
        ],
        out_specs=(pl.BlockSpec((T, tile_n), lambda j: (0, j)),
                   _smem_spec()),
        scratch_shapes=[pltpu.VMEM((S, 1), jnp.float32),    # per-sample sums
                        pltpu.VMEM((1, 1), jnp.float32)],   # mask-sum denominator
        compiler_params=pltpu.CompilerParams(
            dimension_semantics=("arbitrary",),              # accumulation axis
            vmem_limit_bytes=32 * 1024 * 1024),               # sized for v7x 64 MiB
        cost_estimate=_cost(out2, gt2, seq, T * N * 4),
    )(seq, out2, gt2)


@jax.jit
def fused_mask_mse_pallas(outputs, ground_truth, seq_list):
    """outputs (S,T,N,C), ground_truth (T,N,C), seq_list (T,N)
    -> (loss_mask (T,N) f32, scalar f32 loss) from a single pallas_call."""
    S, T, N, C = outputs.shape
    tile_nc = _pick_tile_nc(S, T, N * C, C, outputs.dtype.itemsize)
    if tile_nc is None:
        mask, loss = _fused_small_call(outputs, ground_truth, seq_list)
    else:
        mask, loss = _fused_tiled_call(outputs, ground_truth, seq_list, tile_nc)
    return mask, loss[0, 0]


# ----------------------------------------------------------------------------
# Stand-alone kernels (API-compatible with the torch module's split methods).
# ----------------------------------------------------------------------------
def _loss_mask_kernel(seq_ref, mask_ref):
    mask_ref[...] = _cum_mask(seq_ref[...].astype(jnp.float32))


@jax.jit
def compute_loss_mask_pallas(seq_list):
    T, N = seq_list.shape
    return pl.pallas_call(
        _loss_mask_kernel,
        out_shape=jax.ShapeDtypeStruct((T, N), jnp.float32),
        in_specs=[_vmem_spec()],
        out_specs=_vmem_spec(),
    )(seq_list.astype(jnp.float32))


def _mse_kernel(mask_ref, out_ref, gt_ref, loss_ref, *, coords):
    mask = mask_ref[...].astype(jnp.float32)                 # raw (T, N) loss_mask
    mask2 = _expand_mask(mask, coords)                       # (T, N*C) in-kernel
    out = out_ref[...].astype(jnp.float32)                   # (S, T, N*C)
    gt = gt_ref[...].astype(jnp.float32)
    d = out - gt[None, :, :]
    masked = d * d * mask2[None, :, :]
    per_sample = jnp.sum(jnp.sum(masked, axis=2), axis=1, keepdims=True)
    loss_ref[0, 0] = jnp.min(per_sample) / jnp.sum(mask)     # denom is C-independent


@jax.jit
def mse_loss_pallas(outputs, ground_truth, loss_mask):
    S, T, N, C = outputs.shape
    out2 = outputs.reshape(S, T, N * C)                      # free reshape
    gt2 = ground_truth.reshape(T, N * C)
    mask = loss_mask.astype(jnp.float32)
    loss = pl.pallas_call(
        functools.partial(_mse_kernel, coords=C),
        out_shape=jax.ShapeDtypeStruct((1, 1), jnp.float32),
        in_specs=[_vmem_spec(), _vmem_spec(), _vmem_spec()],
        out_specs=_smem_spec(),
        cost_estimate=_cost(out2, gt2, mask, 4),
    )(mask, out2, gt2)
    return loss[0, 0]
    # TODO(synk): tile this stand-alone path over the agent axis like the fused
    # path when called at production trajectory sizes.


# ----------------------------------------------------------------------------
# Base_Model equivalent (numeric parts only; bookkeeping dicts are Python).
# ----------------------------------------------------------------------------
class BaseModelPallas:
    def __init__(self):
        self.is_trainable = True  # no learnable parameters in the base model

    def init_losses(self):
        return {"traj_MSE_loss": 0}

    def set_losses_coeffs(self):
        return {"traj_MSE_loss": 1}

    def init_sample_losses(self):
        return {k: [] for k in self.init_losses().keys()}

    def init_train_metrics(self):
        return {"ADE": [], "FDE": []}

    def init_test_metrics(self):
        return {"ADE": [], "FDE": [], "ADE_world": [], "FDE_world": [], "NLL": []}

    def init_best_metrics(self):
        return {k: 1e9 for k in ("ADE", "FDE", "ADE_world", "FDE_world")}

    def best_valid_metric(self):
        return "ADE"

    def compute_loss_mask(self, seq_list, obs_length: int = 8):
        return compute_loss_mask_pallas(seq_list)

    def compute_model_losses(self, outputs, ground_truth, loss_mask,
                             inputs=None, aux_outputs=None):
        return {"traj_MSE_loss": mse_loss_pallas(outputs, ground_truth, loss_mask)}

    # Fused fast path: mask + best-of-samples masked MSE in a single pallas_call.
    def compute_mask_and_losses(self, outputs, ground_truth, seq_list):
        loss_mask, loss = fused_mask_mse_pallas(outputs, ground_truth, seq_list)
        return loss_mask, {"traj_MSE_loss": loss}

    # TODO(synk): forward() is NotImplementedError in the reference module;
    # prepare_inputs / compute_model_metrics (ADE/FDE/NLL, scene world-coord
    # transforms) depend on dataset objects and are out of kernel scope.


# ----------------------------------------------------------------------------
# Plain-JAX references for correctness check.
# ----------------------------------------------------------------------------
def _ref_loss_mask(seq_list):
    m = jnp.cumprod(seq_list, axis=0)
    return m.at[0].set(0.0)


def _ref_mse(outputs, ground_truth, loss_mask):
    se = jnp.sum((outputs - ground_truth[None]) ** 2, axis=-1)
    loss = se * loss_mask[None]
    loss = loss.sum(axis=-1).sum(axis=-1) / loss_mask.sum()
    return jnp.min(loss, axis=0)


if __name__ == "__main__":
    key = jax.random.PRNGKey(0)
    k1, k2, k3, k4, k5, k6 = jax.random.split(key, 6)

    model = BaseModelPallas()

    # --- Small shapes: whole-array (no-grid) fused path ----------------------
    S, T, N = 4, 8, 16
    seq_small = (jax.random.uniform(k1, (T, N)) > 0.3).astype(jnp.float32)
    seq_small = seq_small.at[:, :4].set(1.0)        # a few fully-present agents
    out_small = jax.random.normal(k2, (S, T, N, 2), jnp.float32)
    gt_small = jax.random.normal(k3, (T, N, 2), jnp.float32)

    mask_fused, losses_fused = model.compute_mask_and_losses(out_small, gt_small, seq_small)
    loss_fused = losses_fused["traj_MSE_loss"]

    mask_split = model.compute_loss_mask(seq_small)
    loss_split = model.compute_model_losses(out_small, gt_small, mask_split)["traj_MSE_loss"]

    # --- Larger shapes: grid-tiled fused path (2 agent tiles, accumulators) --
    S2, T2, N2 = 4, 8, 256
    seq_big = (jax.random.uniform(k4, (T2, N2)) > 0.3).astype(jnp.float32)
    seq_big = seq_big.at[:, :8].set(1.0)
    out_big = jax.random.normal(k5, (S2, T2, N2, 2), jnp.float32)
    gt_big = jax.random.normal(k6, (T2, N2, 2), jnp.float32)

    mask_big, losses_big = model.compute_mask_and_losses(out_big, gt_big, seq_big)
    loss_big = losses_big["traj_MSE_loss"]

    jax.block_until_ready((mask_fused, loss_fused, mask_split, loss_split,
                           mask_big, loss_big))

    # --- References -----------------------------------------------------------
    ref_mask_s = _ref_loss_mask(seq_small)
    ref_loss_s = _ref_mse(out_small, gt_small, ref_mask_s)
    ref_mask_b = _ref_loss_mask(seq_big)
    ref_loss_b = _ref_mse(out_big, gt_big, ref_mask_b)

    assert jnp.allclose(mask_fused, ref_mask_s), "fused loss mask mismatch"
    assert jnp.allclose(mask_split, ref_mask_s), "loss mask mismatch"
    assert jnp.allclose(loss_fused, ref_loss_s, rtol=1e-4, atol=1e-4), "fused MSE mismatch"
    assert jnp.allclose(loss_split, ref_loss_s, rtol=1e-4, atol=1e-4), "MSE loss mismatch"
    assert jnp.allclose(mask_big, ref_mask_b), "tiled loss mask mismatch"
    assert jnp.allclose(loss_big, ref_loss_b, rtol=1e-4, atol=1e-4), "tiled MSE mismatch"

    print("KERNEL_OK")
</pallas_src>

<mosaic_0001>
module attributes {stable_mosaic.version = 11 : i64} {
  func.func @_fused_kernel(%arg0: memref<8x16xf32, #tpu.memory_space<vmem>>, %arg1: memref<4x8x32xf32, #tpu.memory_space<vmem>>, %arg2: memref<8x32xf32, #tpu.memory_space<vmem>>, %arg3: memref<8x16xf32, #tpu.memory_space<vmem>>, %arg4: memref<1x1xf32, #tpu.memory_space<smem>>) attributes {dimension_semantics = [], scalar_prefetch = 0 : i64, scratch_operands = 0 : i64, tpu.core_type = #tpu.core_type<tc>} {
    %c0 = arith.constant 0 : index
    %c0_0 = arith.constant 0 : index
    %0 = vector.load %arg0[%c0, %c0_0] : memref<8x16xf32, #tpu.memory_space<vmem>>, vector<8x16xf32>
    %cst = arith.constant 5.000000e-01 : f32
    %1 = vector.broadcast %cst : f32 to vector<8x16xf32>
    %2 = arith.cmpf ogt, %0, %1 : vector<8x16xf32>
    %cst_1 = arith.constant 0.000000e+00 : f32
    %cst_2 = arith.constant 1.000000e+00 : f32
    %3 = vector.broadcast %cst_1 : f32 to vector<8x16xf32>
    %4 = vector.broadcast %cst_2 : f32 to vector<8x16xf32>
    %5 = arith.select %2, %3, %4 : vector<8x16xi1>, vector<8x16xf32>
    %6 = tpu.iota {dimensions = array<i32: 0>} : vector<8x16xi32>
    %c1_i32 = arith.constant 1 : i32
    %7 = tpu.dynamic_rotate %5 by %c1_i32 dim 0 : vector<8x16xf32>, i32 -> vector<8x16xf32>
    %c1_i32_3 = arith.constant 1 : i32
    %8 = vector.broadcast %c1_i32_3 : i32 to vector<8x16xi32>
    %9 = arith.cmpi sge, %6, %8 : vector<8x16xi32>
    %cst_4 = arith.constant 0.000000e+00 : f32
    %10 = vector.broadcast %cst_4 : f32 to vector<8x16xf32>
    %11 = arith.select %9, %7, %10 : vector<8x16xi1>, vector<8x16xf32>
    %12 = arith.addf %5, %11 : vector<8x16xf32>
    %c2_i32 = arith.constant 2 : i32
    %13 = tpu.dynamic_rotate %12 by %c2_i32 dim 0 : vector<8x16xf32>, i32 -> vector<8x16xf32>
    %c2_i32_5 = arith.constant 2 : i32
    %14 = vector.broadcast %c2_i32_5 : i32 to vector<8x16xi32>
    %15 = arith.cmpi sge, %6, %14 : vector<8x16xi32>
    %cst_6 = arith.constant 0.000000e+00 : f32
    %16 = vector.broadcast %cst_6 : f32 to vector<8x16xf32>
    %17 = arith.select %15, %13, %16 : vector<8x16xi1>, vector<8x16xf32>
    %18 = arith.addf %12, %17 : vector<8x16xf32>
    %c4_i32 = arith.constant 4 : i32
    %19 = tpu.dynamic_rotate %18 by %c4_i32 dim 0 : vector<8x16xf32>, i32 -> vector<8x16xf32>
    %c4_i32_7 = arith.constant 4 : i32
    %20 = vector.broadcast %c4_i32_7 : i32 to vector<8x16xi32>
    %21 = arith.cmpi sge, %6, %20 : vector<8x16xi32>
    %cst_8 = arith.constant 0.000000e+00 : f32
    %22 = vector.broadcast %cst_8 : f32 to vector<8x16xf32>
    %23 = arith.select %21, %19, %22 : vector<8x16xi1>, vector<8x16xf32>
    %24 = arith.addf %18, %23 : vector<8x16xf32>
    %cst_9 = arith.constant 0.000000e+00 : f32
    %25 = vector.broadcast %cst_9 : f32 to vector<8x16xf32>
    %26 = arith.cmpf oeq, %24, %25 : vector<8x16xf32>
    %cst_10 = arith.constant 1.000000e+00 : f32
    %cst_11 = arith.constant 0.000000e+00 : f32
    %27 = vector.broadcast %cst_10 : f32 to vector<8x16xf32>
    %28 = vector.broadcast %cst_11 : f32 to vector<8x16xf32>
    %29 = arith.select %26, %27, %28 : vector<8x16xi1>, vector<8x16xf32>
    %c0_i32 = arith.constant 0 : i32
    %30 = vector.broadcast %c0_i32 : i32 to vector<8x16xi32>
    %31 = arith.cmpi eq, %6, %30 : vector<8x16xi32>
    %cst_12 = arith.constant 0.000000e+00 : f32
    %32 = vector.broadcast %cst_12 : f32 to vector<8x16xf32>
    %33 = arith.select %31, %32, %29 : vector<8x16xi1>, vector<8x16xf32>
    %c0_13 = arith.constant 0 : index
    %c0_14 = arith.constant 0 : index
    %34 = vector.load %arg3[%c0_13, %c0_14] : memref<8x16xf32, #tpu.memory_space<vmem>>, vector<8x16xf32>
    tpu.vector_store %arg3[%c0_13, %c0_14], %33 {strides = array<i32>} : memref<8x16xf32, #tpu.memory_space<vmem>>, vector<8x16xf32>,
    %35 = tpu.iota {dimensions = array<i32: 0>} : vector<16x32xi32>
    %36 = tpu.iota {dimensions = array<i32: 1>} : vector<16x32xi32>
    %c2_i32_15 = arith.constant 2 : i32
    %37 = vector.broadcast %c2_i32_15 : i32 to vector<16x32xi32>
    %38 = arith.muli %35, %37 : vector<16x32xi32>
    %39 = arith.cmpi sge, %36, %38 : vector<16x32xi32>
    %c2_i32_16 = arith.constant 2 : i32
    %40 = vector.broadcast %c2_i32_16 : i32 to vector<16x32xi32>
    %41 = arith.addi %38, %40 : vector<16x32xi32>
    %42 = arith.cmpi slt, %36, %41 : vector<16x32xi32>
    %43 = arith.andi %39, %42 : vector<16x32xi1>
    %44 = arith.extui %43 : vector<16x32xi1> to vector<16x32xi32>
    %45 = arith.sitofp %44 : vector<16x32xi32> to vector<16x32xf32>
    %cst_17 = arith.constant dense<0.000000e+00> : vector<8x32xf32>
    %46 = tpu.matmul %33, %45, %cst_17 {dimension_numbers = #tpu.dot_dimension_numbers<[1], [0], [0], [1], [0, 0, 1, 1], [], []>} : vector<8x16xf32>, vector<16x32xf32>, vector<8x32xf32> -> vector<8x32xf32>
    %c0_18 = arith.constant 0 : index
    %c0_19 = arith.constant 0 : index
    %c0_20 = arith.constant 0 : index
    %47 = vector.load %arg1[%c0_18, %c0_19, %c0_20] : memref<4x8x32xf32, #tpu.memory_space<vmem>>, vector<4x8x32xf32>
    %c0_21 = arith.constant 0 : index
    %c0_22 = arith.constant 0 : index
    %48 = vector.load %arg2[%c0_21, %c0_22] : memref<8x32xf32, #tpu.memory_space<vmem>>, vector<8x32xf32>
    %49 = vector.shape_cast %48 : vector<8x32xf32> to vector<1x8x32xf32>
    %50 = vector.broadcast %49 : vector<1x8x32xf32> to vector<4x8x32xf32>
    %51 = arith.subf %47, %50 : vector<4x8x32xf32>
    %52 = arith.mulf %51, %51 : vector<4x8x32xf32>
    %53 = vector.shape_cast %46 : vector<8x32xf32> to vector<1x8x32xf32>
    %54 = vector.broadcast %53 : vector<1x8x32xf32> to vector<4x8x32xf32>
    %55 = arith.mulf %52, %54 : vector<4x8x32xf32>
    %cst_23 = arith.constant dense<0.000000e+00> : vector<4x8xf32>
    %56 = vector.multi_reduction <add>, %55, %cst_23 [2] : vector<4x8x32xf32> to vector<4x8xf32>
    %cst_24 = arith.constant dense<0.000000e+00> : vector<4xf32>
    %57 = vector.multi_reduction <add>, %56, %cst_24 [1] : vector<4x8xf32> to vector<4xf32>
    %58 = vector.shape_cast %57 : vector<4xf32> to vector<4x1xf32>
    %59 = vector.shape_cast %58 : vector<4x1xf32> to vector<1x4x1xf32>
    %cst_25 = arith.constant dense<0x7F800000> : vector<1xf32>
    %60 = vector.multi_reduction <minimumf>, %59, %cst_25 [1, 2] : vector<1x4x1xf32> to vector<1xf32>
    %61 = vector.shape_cast %60 : vector<1xf32> to vector<1x1x1xf32>
    %62 = vector.extract %61[0, 0, 0] : f32 from vector<1x1x1xf32>
    %63 = vector.shape_cast %33 : vector<8x16xf32> to vector<1x8x16xf32>
    %cst_26 = arith.constant dense<0.000000e+00> : vector<1xf32>
    %64 = vector.multi_reduction <add>, %63, %cst_26 [1, 2] : vector<1x8x16xf32> to vector<1xf32>
    %65 = vector.shape_cast %64 : vector<1xf32> to vector<1x1x1xf32>
    %66 = vector.extract %65[0, 0, 0] : f32 from vector<1x1x1xf32>
    %67 = arith.divf %62, %66 : f32
    %c0_27 = arith.constant 0 : index
    %c0_28 = arith.constant 0 : index
    %68 = memref.load %arg4[%c0_27, %c0_28] : memref<1x1xf32, #tpu.memory_space<smem>>
    memref.store %67, %arg4[%c0_27, %c0_28] : memref<1x1xf32, #tpu.memory_space<smem>>
    return
  }
}

</mosaic_0001>

<llo_original>
// kernel: fused_mask_mse_pallas.1
$region0: #{fused_mask_mse_pallas.1}
  #allocation0 [shape = 'u32[]', space=smem, size = 0x4, offset = 0x4, fixed_abs, tag = 'smem constant byte address 0x4 - core index']
  #allocation1 [shape = 'u32[72,128]{1,0:T(1,128)}', space=vmem, size = 0x9000, scoped, tag = 'internal scratch']
  %s0 = inlined_call_operand.vmem [shape: f32[8,16], index: 0, kind: input, shape index: {}]
  %s1 = inlined_call_operand.vmem [shape: f32[4,8,32], index: 1, kind: input, shape index: {}]
  %s2 = inlined_call_operand.vmem [shape: f32[8,32], index: 2, kind: input, shape index: {}]
  %s3 = inlined_call_operand.hbm [shape: f32[8,16], index: 3, kind: output, shape index: {0}]
  %s4 = inlined_call_operand.hbm [shape: f32[1,1], index: 4, kind: output, shape index: {1}]
  %5 = xla_tuple %s3, %s4
  %s6 = sld [smem:[#allocation0]]
  $region30: #{fused_mask_mse_pallas.1} parent=0
    _
  %s8 = ssub.s32 1, %s6
  %s9 = scalar_select 0, %s8, %s6
  $region1: #{fused_mask_mse_pallas.1} parent=0
    #allocation2 [shape = 'u8[4096]{0}', space=vmem, size = 0x1000, scoped, tag = 'output window, operand 0, single buffered']
    #allocation3 [shape = 's32[1]{0}', space=sflag, size = 0x4, scoped, tag = 'scoped memory for fused_mask_mse_pallas.1']
    #allocation4 [shape = 's32[1]{0}', space=sflag, size = 0x4, scoped, tag = 'scoped memory for fused_mask_mse_pallas.1']
    #allocation5 [shape = 'u8[512]{0}', space=smem, size = 0x200, scoped, tag = 'output window, operand 1, single buffered']
    %10 = vsyncpa [#allocation3], 0
    %11 = vsyncpa [#allocation4], 0
    // Predicated region
    $region2: #{fused_mask_mse_pallas.1} parent=1 // pred_check
      _
    $region3: #{fused_mask_mse_pallas.1} parent=1 // pred_check_branch
      %13 = sbr.rel (0) target = $region5
    $region4: #{fused_mask_mse_pallas.1} parent=1 // pred_region
      _
    $region5: #{fused_mask_mse_pallas.1} parent=1 // pred_fallthru
      _
    // Predicated region
    $region6: #{fused_mask_mse_pallas.1} parent=1 // pred_check
      _
    $region7: #{fused_mask_mse_pallas.1} parent=1 // pred_check_branch
      %15 = sbr.rel (0) target = $region9
    $region8: #{fused_mask_mse_pallas.1} parent=1 // pred_region
      _
    $region9: #{fused_mask_mse_pallas.1} parent=1 // pred_fallthru
      _
    // Predicated region
    $region10: #{fused_mask_mse_pallas.1} parent=1 // pred_check
      _
    $region11: #{fused_mask_mse_pallas.1} parent=1 // pred_check_branch
      %17 = sbr.rel (0) target = $region13
    $region12: #{fused_mask_mse_pallas.1} parent=1 // pred_region
      _
    $region13: #{fused_mask_mse_pallas.1} parent=1 // pred_fallthru
      _
    %v18 = vld [vmem:[%s0] sm:$0xff]
    %vm19 = vcmp.gt.f32.partialorder %v18, 0.5
    %v20 = vsel %vm19, 0.0, 1.0
    %v21 = vlaneseq
    %v22 = vshrl.u32 %v21, 7
    %v23 = vrot.slane %v20, 7
    %vm24 = vcmp.ge.s32.totalorder %v22, 1
    %v25 = vsel %vm24, %v23, 0.0
    %v26 = vadd.f32 %v20, %v25
    %v27 = vrot.slane %v26, 6
    %vm28 = vcmp.ge.s32.totalorder %v22, 2
    %v29 = vsel %vm28, %v27, 0.0
    %v30 = vadd.f32 %v26, %v29
    %v31 = vrot.slane %v30, 4
    %vm32 = vcmp.ge.s32.totalorder %v22, 4
    %v33 = vsel %vm32, %v31, 0.0
    %v34 = vadd.f32 %v30, %v33
    %vm35 = vcmp.eq.f32.partialorder %v34, 0.0
    %v36 = vsel %vm35, 1.0, 0.0
    %vm37 = vcmp.eq.s32.totalorder %v22, 0
    %v38 = vsel %vm37, 0.0, %v36
    %vm39 = vcmask 130048
    %40 = vst.msk [vmem:[#allocation2] sm:$0xff] %vm39, %v38
    %v41 = vadd.s32 %v22, 8
    %v42 = vlaneseq
    %v43 = vand.u32 %v42, 127
    %v44 = vmul.u32 %v22, 2
    %v45 = vmul.u32 %v41, 2
    %vm46 = vcmp.ge.s32.totalorder %v43, %v44
    %vm47 = vcmp.ge.s32.totalorder %v43, %v45
    %v48 = vadd.s32 %v44, 2
    %v49 = vadd.s32 %v45, 2
    %vm50 = vcmp.lt.s32.totalorder %v43, %v48
    %vm51 = vcmp.lt.s32.totalorder %v43, %v49
    %vm52 = vmand %vm46, %vm50
    %vm53 = vmand %vm47, %vm51
    %v54 = vsel %vm52, 1, 0
    %v55 = vsel %vm53, 1, 0
    %v56 = vcvt.s32.f32 %v54
    %v57 = vcvt.s32.f32 %v55
    %v59 = vsel %vm39, %v38, 0
    %61 = vmatpush.msra.mxu0 0.0
    %62 = vmatpush.msra.mxu0 0.0
    %63 = vmatpush.msra.mxu0 0.0
    %64 = vmatpush.msra.mxu0 0.0
    %65 = vmatpush.msra.mxu0 0.0
    %66 = vmatpush.msra.mxu0 0.0
    %67 = vmatpush.msra.mxu0 0.0
    %68 = vmatpush.msra.mxu0 0.0
    %69 = vmatpush.msra.mxu0 0.0
    %70 = vmatpush.msra.mxu0 0.0
    %71 = vmatpush.msra.mxu0 0.0
    %72 = vmatpush.msra.mxu0 0.0
    %73 = vmatpush.msra.mxu0 0.0
    %74 = vmatpush.msra.mxu0 0.0
    %75 = vmatpush.msra.mxu0 %v57
    %76 = vmatpush.msra.mxu0 %v56
    %77 = vmatmul.f32.gmra.mxu0 %v59
    %v78 = vpop.f32.mrf.mxu0
    %v79 = vadd.f32 0.0, %v78
    %80 = vdwg.mxu0
    %v81 = vld [vmem:[%s1] sm:$0xff]
    %v82 = vld [vmem:[%s1 + $0x8] sm:$0xff]
    %v83 = vld [vmem:[%s1 + $0x10] sm:$0xff]
    %v84 = vld [vmem:[%s1 + $0x18] sm:$0xff]
    %v85 = vld [vmem:[%s2] sm:$0xff]
    %v86 = vsub.f32 %v81, %v85
    %v87 = vsub.f32 %v82, %v85
    %v88 = vsub.f32 %v83, %v85
    %v89 = vsub.f32 %v84, %v85
    %v90 = vmul.f32 %v86, %v86
    %v91 = vmul.f32 %v87, %v87
    %v92 = vmul.f32 %v88, %v88
    %v93 = vmul.f32 %v89, %v89
    %v94 = vmul.f32 %v90, %v79
    %v95 = vmul.f32 %v91, %v79
    %v96 = vmul.f32 %v92, %v79
    %v97 = vmul.f32 %v93, %v79
    %vm98 = vcmask 261120
    %v99 = vsel %vm98, %v94, 0.0
    %100 = vadd.xlane.f32.xlu0 %v99
    %v101 = vpop.xlane.xlu0 %100
    %v102 = vsel %vm98, %v95, 0.0
    %103 = vadd.xlane.f32.xlu0 %v102
    %v104 = vpop.xlane.xlu0 %103
    %v105 = vsel %vm98, %v96, 0.0
    %106 = vadd.xlane.f32.xlu0 %v105
    %v107 = vpop.xlane.xlu0 %106
    %v108 = vsel %vm98, %v97, 0.0
    %109 = vadd.xlane.f32.xlu0 %v108
    %v110 = vpop.xlane.xlu0 %109
    %v115 = vperm.slane %v101, %v43
    %v116 = vperm.slane %v104, %v43
    %v117 = vperm.slane %v107, %v43
    %v118 = vperm.slane %v110, %v43
    %vm119 = vcmask 1041409
    %v120 = vsel %vm119, %v116, %v115
    %vm121 = vcmask 1042434
    %v122 = vsel %vm121, %v117, %v120
    %vm123 = vcmask 1043459
    %v124 = vsel %vm123, %v118, %v122
    %vm126 = vcmask 60416
    %v127 = vsel %vm126, %v124, 0.0
    %128 = vadd.xlane.f32.xlu0 %v127
    %v129 = vpop.xlane.xlu0 %128
    %vm130 = vcmask 1043456
    %v131 = vsel %vm130, %v129, inf
    %v132 = vrot.slane %v131, 4
    %v133 = vmin.f32 %v131, %v132
    %v134 = vrot.slane %v133, 2
    %v135 = vmin.f32 %v133, %v134
    %v136 = vrot.slane %v135, 1
    %v137 = vmin.f32 %v135, %v136
    %s138 = vtos %v137
    %v139 = vsel %vm39, %v38, 0.0
    %140 = vadd.xlane.f32.xlu0 %v139
    %v141 = vpop.xlane.xlu0 %140
    %v142 = vrot.slane %v141, 4
    %v143 = vadd.f32 %v141, %v142
    %v144 = vrot.slane %v143, 2
    %v145 = vadd.f32 %v143, %v144
    %v146 = vrot.slane %v145, 1
    %v147 = vadd.f32 %v145, %v146
    %s148 = vtos %v147
    %v149 = vstv %s148
    %v150 = vrcp.pop %v149
    %v151 = vmul.f32 %v149, %v150
    %v152 = vsub.f32 1.0, %v151
    %v153 = vmul.f32 %v150, %v152
    %v154 = vadd.f32 %v150, %v153
    %vm155 = vweird.f32 %v149
    %vm156 = vweird.f32 %v150
    %vm157 = vmor %vm155, %vm156
    %v158 = vsel %vm157, %v150, %v154
    %v159 = vand.u32 2147483647, %v149
    %vm160 = vcmp.eq.f32.partialorder %v159, 8.507059e+37
    %v161 = vand.u32 %v149, 2147483648
    %v162 = vor.u32 1.1754944e-38, %v161
    %v163 = vsel %vm160, %v162, %v158
    %s164 = vtos %v163
    %s165 = smul.f32 %s138, %s164
    %s166 = scalar_lea.smem [#allocation5], 0
    %167 = sst [smem:[%s166]] %s165
    // Predicated region
    $region14: #{fused_mask_mse_pallas.1} parent=1 // pred_check
      _
    $region15: #{fused_mask_mse_pallas.1} parent=1 // pred_check_branch
      %169 = sbr.rel (0) target = $region17
    $region16: #{fused_mask_mse_pallas.1} parent=1 // pred_region
      %171 = vsyncadd [#allocation3], 0
      %s173 = sshll.u32 [#allocation2], 4
      %s174 = int_to_ptr.vmem [resolvable:$true] %s173
      %s175 = sshll.u32 %s3, 4
      %s176 = int_to_ptr.hbm [resolvable:$true] %s175
      %178 = dma.vmem_to_hbm [thread:$0]  %s174, 128, %s176, [#allocation3]
    $region17: #{fused_mask_mse_pallas.1} parent=1 // pred_fallthru
      _
    // Predicated region
    $region18: #{fused_mask_mse_pallas.1} parent=1 // pred_check
      _
    $region19: #{fused_mask_mse_pallas.1} parent=1 // pred_check_branch
      %180 = sbr.rel (0) target = $region21
    $region20: #{fused_mask_mse_pallas.1} parent=1 // pred_region
      %182 = vsyncadd [#allocation4], 0
      %s184 = sshll.u32 %s4, 4
      %s185 = int_to_ptr.hbm [resolvable:$true] %s184
      %187 = dma.smem_to_hbm [#allocation5], 16, %s185, [#allocation4]
    $region21: #{fused_mask_mse_pallas.1} parent=1 // pred_fallthru
      _
    // Predicated region
    $region22: #{fused_mask_mse_pallas.1} parent=1 // pred_check
      _
    $region23: #{fused_mask_mse_pallas.1} parent=1 // pred_check_branch
      %189 = sbr.rel (0) target = $region25
    $region24: #{fused_mask_mse_pallas.1} parent=1 // pred_region
      %191 = dma.done [#allocation3], 128
    $region25: #{fused_mask_mse_pallas.1} parent=1 // pred_fallthru
      _
    // Predicated region
    $region26: #{fused_mask_mse_pallas.1} parent=1 // pred_check
      _
    $region27: #{fused_mask_mse_pallas.1} parent=1 // pred_check_branch
      %193 = sbr.rel (0) target = $region29
    $region28: #{fused_mask_mse_pallas.1} parent=1 // pred_region
      %195 = dma.done [#allocation4], 16
    $region29: #{fused_mask_mse_pallas.1} parent=1 // pred_fallthru
      _
    %196 = sfence
    %197 = vsyncpa [#allocation3], 1
    %198 = vsyncpa [#allocation4], 1

</llo_original>
